<compile_context>
chip_gen: v7x
topology: tpu7x:2x2x1
jax: 0.10.0
libtpu: 0.0.40
codegen_flags: <defaults>
</compile_context>

<pallas_src>
import functools

import jax
import jax.numpy as jnp
from jax.experimental import pallas as pl
from jax.experimental.pallas import tpu as pltpu

_OUT_PAD = 128  # lane-dense padded logits width (real out_dim = 4)


def _mlp_kernel(x_ref, w1_ref, b1_ref, w2_ref, b2_ref, w3_ref, b3_ref, o_ref):
    # Layer 1: Linear (bf16 MXU operands, f32 accumulate) + bias + ReLU.
    x = x_ref[...].astype(jnp.bfloat16)
    h1 = jnp.dot(x, w1_ref[...], preferred_element_type=jnp.float32)
    h1 = jnp.maximum(h1 + b1_ref[...], 0.0)

    # Layer 2: Linear + bias + ReLU.  (Dropout == identity in eval mode.)
    h2 = jnp.dot(h1.astype(jnp.bfloat16), w2_ref[...],
                 preferred_element_type=jnp.float32)
    h2 = jnp.maximum(h2 + b2_ref[...], 0.0)

    # Layer 3: Linear to 128 padded logit lanes (real logits live in [:, :4]).
    out = jnp.dot(h2.astype(jnp.bfloat16), w3_ref[...],
                  preferred_element_type=jnp.float32)
    o_ref[...] = (out + b3_ref[...]).astype(o_ref.dtype)

    # TODO(synk): training-mode Dropout (pltpu.prng_seed per-tile seed +
    # pltpu.prng_random_bits mask) not implemented; this matches eval().


def _round_up(a, m):
    return (a + m - 1) // m * m


@functools.partial(jax.jit, static_argnames=("tile_b",))
def enhanced_tabular_mlp(x, params, *, tile_b=256):
    """Fused 3-layer MLP forward, batch-tiled over a 1-D Pallas grid."""
    w1, b1, w2, b2, w3, b3 = params
    batch, input_dim = x.shape
    h1d = w1.shape[1]
    h2d = w2.shape[1]
    out_dim = w3.shape[1]

    # --- one-time weight prep (bf16 MXU operands, lane-dense padded layer 3) ---
    w1b = w1.astype(jnp.bfloat16)
    w2b = w2.astype(jnp.bfloat16)
    w3p = jnp.zeros((h2d, _OUT_PAD), jnp.float32).at[:, :out_dim].set(w3)
    w3p = w3p.astype(jnp.bfloat16)
    b3p = jnp.zeros((1, _OUT_PAD), jnp.float32).at[:, :out_dim].set(b3)

    # --- batch tiling: multiple of 8 sublanes, padded batch --------------------
    tb = min(tile_b, _round_up(batch, 8))
    batch_p = _round_up(batch, tb)
    if batch_p != batch:
        x = jnp.pad(x, ((0, batch_p - batch), (0, 0)))
    grid = (batch_p // tb,)

    resident = lambda shape: pl.BlockSpec(shape, lambda i: (0, 0))  # stays in VMEM

    flops = 2 * batch_p * (input_dim * h1d + h1d * h2d + h2d * _OUT_PAD)
    bytes_accessed = (
        batch_p * input_dim * 4                      # x (f32 in HBM)
        + (input_dim * h1d + h1d * h2d + h2d * _OUT_PAD) * 2   # bf16 weights
        + (h1d + h2d + _OUT_PAD) * 4                 # f32 biases
        + batch_p * _OUT_PAD * 4                     # padded output
    )

    out_padded = pl.pallas_call(
        _mlp_kernel,
        out_shape=jax.ShapeDtypeStruct((batch_p, _OUT_PAD), jnp.float32),
        grid=grid,
        in_specs=[
            pl.BlockSpec((tb, input_dim), lambda i: (i, 0)),   # x tile (pipelined)
            resident(w1b.shape), resident(b1.shape),
            resident(w2b.shape), resident(b2.shape),
            resident(w3p.shape), resident(b3p.shape),
        ],
        out_specs=pl.BlockSpec((tb, _OUT_PAD), lambda i: (i, 0)),
        compiler_params=pltpu.CompilerParams(
            dimension_semantics=("parallel",)),
        cost_estimate=pl.CostEstimate(
            flops=flops, transcendentals=0, bytes_accessed=bytes_accessed),
    )(x, w1b, b1, w2b, b2, w3p, b3p)

    return out_padded[:batch, :out_dim]


def init_params(key, input_dim, hidden_dim=256):
    """PyTorch-Linear-style init (uniform +/- 1/sqrt(fan_in)).

    Weights are (in_features, out_features) (transposed vs. PyTorch) so the
    kernel computes x @ W; biases are (1, out_features)."""
    dims = [(input_dim, hidden_dim),
            (hidden_dim, hidden_dim // 2),
            (hidden_dim // 2, 4)]
    params = []
    for fan_in, fan_out in dims:
        key, kw, kb = jax.random.split(key, 3)
        bound = 1.0 / jnp.sqrt(fan_in)
        w = jax.random.uniform(kw, (fan_in, fan_out), jnp.float32, -bound, bound)
        b = jax.random.uniform(kb, (1, fan_out), jnp.float32, -bound, bound)
        params += [w, b]
    return tuple(params)


def _ref_forward(x, params):
    """Plain-JAX reference with the same bf16-operand / f32-accumulate path."""
    w1, b1, w2, b2, w3, b3 = params
    bf = jnp.bfloat16
    h = jnp.dot(x.astype(bf), w1.astype(bf), preferred_element_type=jnp.float32)
    h = jnp.maximum(h + b1, 0.0)
    h = jnp.dot(h.astype(bf), w2.astype(bf), preferred_element_type=jnp.float32)
    h = jnp.maximum(h + b2, 0.0)
    out = jnp.dot(h.astype(bf), w3.astype(bf), preferred_element_type=jnp.float32)
    return out + b3


if __name__ == "__main__":
    key = jax.random.PRNGKey(0)
    k_x, k_p = jax.random.split(key)

    batch, input_dim, hidden_dim = 2, 32, 256
    x = jax.random.normal(k_x, (batch, input_dim), dtype=jnp.float32)
    params = init_params(k_p, input_dim, hidden_dim)

    out = enhanced_tabular_mlp(x, params)
    out = jax.block_until_ready(out)

    ref = _ref_forward(x, params)
    assert out.shape == (batch, 4), out.shape
    assert jnp.allclose(out, ref, atol=2e-3, rtol=2e-3), (
        float(jnp.max(jnp.abs(out - ref))))

    print("KERNEL_OK")
</pallas_src>

<mosaic_0001>
module attributes {stable_mosaic.version = 11 : i64} {
  func.func @_mlp_kernel(%arg0: i32, %arg1: memref<8x32xf32, #tpu.memory_space<vmem>>, %arg2: memref<32x256xbf16, #tpu.memory_space<vmem>>, %arg3: memref<1x256xf32, #tpu.memory_space<vmem>>, %arg4: memref<256x128xbf16, #tpu.memory_space<vmem>>, %arg5: memref<1x128xf32, #tpu.memory_space<vmem>>, %arg6: memref<128x128xbf16, #tpu.memory_space<vmem>>, %arg7: memref<1x128xf32, #tpu.memory_space<vmem>>, %arg8: memref<8x128xf32, #tpu.memory_space<vmem>>) attributes {dimension_semantics = [#tpu.dimension_semantics<parallel>], iteration_bounds = array<i64: 1>, scalar_prefetch = 0 : i64, scratch_operands = 0 : i64, tpu.core_type = #tpu.core_type<tc>, window_params = [{transform_indices = @transform_0, window_bounds = array<i64: 8, 32>}, {pipeline_mode = #tpu.pipeline_mode<synchronous>, transform_indices = @transform_1, window_bounds = array<i64: 32, 256>}, {pipeline_mode = #tpu.pipeline_mode<synchronous>, transform_indices = @transform_2, window_bounds = array<i64: 1, 256>}, {pipeline_mode = #tpu.pipeline_mode<synchronous>, transform_indices = @transform_3, window_bounds = array<i64: 256, 128>}, {pipeline_mode = #tpu.pipeline_mode<synchronous>, transform_indices = @transform_4, window_bounds = array<i64: 1, 128>}, {pipeline_mode = #tpu.pipeline_mode<synchronous>, transform_indices = @transform_5, window_bounds = array<i64: 128, 128>}, {pipeline_mode = #tpu.pipeline_mode<synchronous>, transform_indices = @transform_6, window_bounds = array<i64: 1, 128>}, {transform_indices = @transform_7, window_bounds = array<i64: 8, 128>}]} {
    %c0 = arith.constant 0 : index
    %c0_0 = arith.constant 0 : index
    %0 = vector.load %arg1[%c0, %c0_0] : memref<8x32xf32, #tpu.memory_space<vmem>>, vector<8x32xf32>
    %1 = arith.truncf %0 : vector<8x32xf32> to vector<8x32xbf16>
    %c0_1 = arith.constant 0 : index
    %c0_2 = arith.constant 0 : index
    %2 = vector.load %arg2[%c0_1, %c0_2] : memref<32x256xbf16, #tpu.memory_space<vmem>>, vector<32x256xbf16>
    %cst = arith.constant dense<0.000000e+00> : vector<8x256xf32>
    %3 = tpu.matmul %1, %2, %cst {dimension_numbers = #tpu.dot_dimension_numbers<[1], [0], [0], [1], [0, 0, 1, 1], [], []>} : vector<8x32xbf16>, vector<32x256xbf16>, vector<8x256xf32> -> vector<8x256xf32>
    %c0_3 = arith.constant 0 : index
    %c0_4 = arith.constant 0 : index
    %4 = vector.load %arg3[%c0_3, %c0_4] : memref<1x256xf32, #tpu.memory_space<vmem>>, vector<1x256xf32>
    %5 = vector.broadcast %4 : vector<1x256xf32> to vector<8x256xf32>
    %6 = arith.addf %3, %5 : vector<8x256xf32>
    %cst_5 = arith.constant 0.000000e+00 : f32
    %7 = vector.broadcast %cst_5 : f32 to vector<8x256xf32>
    %8 = arith.maximumf %6, %7 : vector<8x256xf32>
    %9 = arith.truncf %8 : vector<8x256xf32> to vector<8x256xbf16>
    %c0_6 = arith.constant 0 : index
    %c0_7 = arith.constant 0 : index
    %10 = vector.load %arg4[%c0_6, %c0_7] : memref<256x128xbf16, #tpu.memory_space<vmem>>, vector<256x128xbf16>
    %cst_8 = arith.constant dense<0.000000e+00> : vector<8x128xf32>
    %11 = tpu.matmul %9, %10, %cst_8 {dimension_numbers = #tpu.dot_dimension_numbers<[1], [0], [0], [1], [0, 0, 1, 1], [], []>} : vector<8x256xbf16>, vector<256x128xbf16>, vector<8x128xf32> -> vector<8x128xf32>
    %c0_9 = arith.constant 0 : index
    %c0_10 = arith.constant 0 : index
    %12 = vector.load %arg5[%c0_9, %c0_10] : memref<1x128xf32, #tpu.memory_space<vmem>>, vector<1x128xf32>
    %13 = vector.broadcast %12 : vector<1x128xf32> to vector<8x128xf32>
    %14 = arith.addf %11, %13 : vector<8x128xf32>
    %cst_11 = arith.constant 0.000000e+00 : f32
    %15 = vector.broadcast %cst_11 : f32 to vector<8x128xf32>
    %16 = arith.maximumf %14, %15 : vector<8x128xf32>
    %17 = arith.truncf %16 : vector<8x128xf32> to vector<8x128xbf16>
    %c0_12 = arith.constant 0 : index
    %c0_13 = arith.constant 0 : index
    %18 = vector.load %arg6[%c0_12, %c0_13] : memref<128x128xbf16, #tpu.memory_space<vmem>>, vector<128x128xbf16>
    %cst_14 = arith.constant dense<0.000000e+00> : vector<8x128xf32>
    %19 = tpu.matmul %17, %18, %cst_14 {dimension_numbers = #tpu.dot_dimension_numbers<[1], [0], [0], [1], [0, 0, 1, 1], [], []>} : vector<8x128xbf16>, vector<128x128xbf16>, vector<8x128xf32> -> vector<8x128xf32>
    %c0_15 = arith.constant 0 : index
    %c0_16 = arith.constant 0 : index
    %20 = vector.load %arg7[%c0_15, %c0_16] : memref<1x128xf32, #tpu.memory_space<vmem>>, vector<1x128xf32>
    %21 = vector.broadcast %20 : vector<1x128xf32> to vector<8x128xf32>
    %22 = arith.addf %19, %21 : vector<8x128xf32>
    %c0_17 = arith.constant 0 : index
    %c0_18 = arith.constant 0 : index
    %23 = vector.load %arg8[%c0_17, %c0_18] : memref<8x128xf32, #tpu.memory_space<vmem>>, vector<8x128xf32>
    tpu.vector_store %arg8[%c0_17, %c0_18], %22 {strides = array<i32>} : memref<8x128xf32, #tpu.memory_space<vmem>>, vector<8x128xf32>,
    return
  }
  func.func @transform_0(%arg0: i32) -> (i32, i32) {
    %c0_i32 = arith.constant 0 : i32
    %c0_i32_0 = arith.constant 0 : i32
    return %arg0, %c0_i32 : i32, i32
  }
  func.func @transform_1(%arg0: i32) -> (i32, i32) {
    %c0_i32 = arith.constant 0 : i32
    %c0_i32_0 = arith.constant 0 : i32
    %c0_i32_1 = arith.constant 0 : i32
    return %c0_i32, %c0_i32_0 : i32, i32
  }
  func.func @transform_2(%arg0: i32) -> (i32, i32) {
    %c0_i32 = arith.constant 0 : i32
    %c0_i32_0 = arith.constant 0 : i32
    %c0_i32_1 = arith.constant 0 : i32
    return %c0_i32, %c0_i32_0 : i32, i32
  }
  func.func @transform_3(%arg0: i32) -> (i32, i32) {
    %c0_i32 = arith.constant 0 : i32
    %c0_i32_0 = arith.constant 0 : i32
    %c0_i32_1 = arith.constant 0 : i32
    return %c0_i32, %c0_i32_0 : i32, i32
  }
  func.func @transform_4(%arg0: i32) -> (i32, i32) {
    %c0_i32 = arith.constant 0 : i32
    %c0_i32_0 = arith.constant 0 : i32
    %c0_i32_1 = arith.constant 0 : i32
    return %c0_i32, %c0_i32_0 : i32, i32
  }
  func.func @transform_5(%arg0: i32) -> (i32, i32) {
    %c0_i32 = arith.constant 0 : i32
    %c0_i32_0 = arith.constant 0 : i32
    %c0_i32_1 = arith.constant 0 : i32
    return %c0_i32, %c0_i32_0 : i32, i32
  }
  func.func @transform_6(%arg0: i32) -> (i32, i32) {
    %c0_i32 = arith.constant 0 : i32
    %c0_i32_0 = arith.constant 0 : i32
    %c0_i32_1 = arith.constant 0 : i32
    return %c0_i32, %c0_i32_0 : i32, i32
  }
  func.func @transform_7(%arg0: i32) -> (i32, i32) {
    %c0_i32 = arith.constant 0 : i32
    %c0_i32_0 = arith.constant 0 : i32
    return %arg0, %c0_i32 : i32, i32
  }
}

</mosaic_0001>

<llo_original>
// kernel: enhanced_tabular_mlp.1
$region0: #{enhanced_tabular_mlp.1}
  #allocation0 [shape = 'u32[]', space=smem, size = 0x4, offset = 0x4, fixed_abs, tag = 'smem constant byte address 0x4 - core index']
  #allocation1 [shape = 'u32[144,128]{1,0:T(1,128)}', space=vmem, size = 0x12000, scoped, tag = 'internal scratch']
  %s0 = inlined_call_operand.vmem [shape: f32[8,32], index: 0, kind: input, shape index: {}]
  %s1 = inlined_call_operand.vmem [shape: bf16[32,256], index: 1, kind: input, shape index: {}]
  %s2 = inlined_call_operand.vmem [shape: f32[1,256], index: 2, kind: input, shape index: {}]
  %s3 = inlined_call_operand.vmem [shape: bf16[256,128], index: 3, kind: input, shape index: {}]
  %s4 = inlined_call_operand.vmem [shape: f32[1,128], index: 4, kind: input, shape index: {}]
  %s5 = inlined_call_operand.vmem [shape: bf16[128,128], index: 5, kind: input, shape index: {}]
  %s6 = inlined_call_operand.vmem [shape: f32[1,128], index: 6, kind: input, shape index: {}]
  %s7 = inlined_call_operand.vmem [shape: f32[8,128], index: 7, kind: output, shape index: {}]
  %s8 = sld [smem:[#allocation0]]
  $region38: #{enhanced_tabular_mlp.1} parent=0
    _
  %s10 = ssub.s32 1, %s8
  %s11 = scalar_select 0, %s10, %s8
  // Predicated region
  $region2: #{enhanced_tabular_mlp.1} parent=0 // pred_check
    _
  $region3: #{enhanced_tabular_mlp.1} parent=0 // pred_check_branch
    %13 = sbr.rel (0) target = $region5
  $region4: #{enhanced_tabular_mlp.1} parent=0 // pred_region
    _
  $region5: #{enhanced_tabular_mlp.1} parent=0 // pred_fallthru
    _
  // Predicated region
  $region6: #{enhanced_tabular_mlp.1} parent=0 // pred_check
    _
  $region7: #{enhanced_tabular_mlp.1} parent=0 // pred_check_branch
    %15 = sbr.rel (0) target = $region9
  $region8: #{enhanced_tabular_mlp.1} parent=0 // pred_region
    _
  $region9: #{enhanced_tabular_mlp.1} parent=0 // pred_fallthru
    _
  // Predicated region
  $region10: #{enhanced_tabular_mlp.1} parent=0 // pred_check
    _
  $region11: #{enhanced_tabular_mlp.1} parent=0 // pred_check_branch
    %17 = sbr.rel (0) target = $region13
  $region12: #{enhanced_tabular_mlp.1} parent=0 // pred_region
    _
  $region13: #{enhanced_tabular_mlp.1} parent=0 // pred_fallthru
    _
  // Predicated region
  $region14: #{enhanced_tabular_mlp.1} parent=0 // pred_check
    _
  $region15: #{enhanced_tabular_mlp.1} parent=0 // pred_check_branch
    %19 = sbr.rel (0) target = $region17
  $region16: #{enhanced_tabular_mlp.1} parent=0 // pred_region
    _
  $region17: #{enhanced_tabular_mlp.1} parent=0 // pred_fallthru
    _
  // Predicated region
  $region18: #{enhanced_tabular_mlp.1} parent=0 // pred_check
    _
  $region19: #{enhanced_tabular_mlp.1} parent=0 // pred_check_branch
    %21 = sbr.rel (0) target = $region21
  $region20: #{enhanced_tabular_mlp.1} parent=0 // pred_region
    _
  $region21: #{enhanced_tabular_mlp.1} parent=0 // pred_fallthru
    _
  // Predicated region
  $region22: #{enhanced_tabular_mlp.1} parent=0 // pred_check
    _
  $region23: #{enhanced_tabular_mlp.1} parent=0 // pred_check_branch
    %23 = sbr.rel (0) target = $region25
  $region24: #{enhanced_tabular_mlp.1} parent=0 // pred_region
    _
  $region25: #{enhanced_tabular_mlp.1} parent=0 // pred_fallthru
    _
  // Predicated region
  $region26: #{enhanced_tabular_mlp.1} parent=0 // pred_check
    _
  $region27: #{enhanced_tabular_mlp.1} parent=0 // pred_check_branch
    %25 = sbr.rel (0) target = $region29
  $region28: #{enhanced_tabular_mlp.1} parent=0 // pred_region
    _
  $region29: #{enhanced_tabular_mlp.1} parent=0 // pred_fallthru
    _
  %v27 = vld [vmem:[%s0] sm:$0xff]
  %v28 = vpack.c.bf16 %v27, %v27
  %v29 = vld [vmem:[%s1] sm:$0xff]
  %v30 = vld [vmem:[%s1 + $0x8] sm:$0xff]
  %v31 = vld [vmem:[%s1 + $0x10] sm:$0xff]
  %v32 = vld [vmem:[%s1 + $0x18] sm:$0xff]
  %v33 = vld [vmem:[%s2] sm:$0x3]
  %v35 = vlaneseq
  %v36 = vshrl.u32 %v35, 7
  %v37 = vsub.s32 0, %v36
  %v38 = vrot.slane %v33, %v37
  %v39 = vlaneseq
  %v40 = vshrl.u32 %v39, 7
  %v41 = vsub.s32 1, %v40
  %v42 = vrot.slane %v33, %v41
  %v49 = vunpack.c.l.b16 %v29
  %v50 = vunpack.c.h.b16 %v29
  %v51 = vunpack.c.l.b16 %v30
  %v52 = vunpack.c.h.b16 %v30
  %v53 = vunpack.c.l.b16 %v31
  %v54 = vunpack.c.h.b16 %v31
  %v55 = vunpack.c.l.b16 %v32
  %v56 = vunpack.c.h.b16 %v32
  %v57 = vpack.c.b16 %v51, %v49
  %v58 = vpack.c.b16 %v52, %v50
  %v59 = vpack.c.b16 %v55, %v53
  %v60 = vpack.c.b16 %v56, %v54
  %vm65 = vcmask 261120
  %v67 = vsel %vm65, %v28, 0
  %69 = vmatprep.subr.bf16.mxu0 %v58
  %70 = vmatpush1.bf16.msra.mxu0 %v57
  %71 = vmatprep.subr.bf16.mxu0 %v60
  %72 = vmatpush1.bf16.msra.mxu0 %v59
  %73 = vmatprep.subr.bf16.mxu0 0
  %74 = vmatpush1.bf16.msra.mxu0 0
  %75 = vmatprep.subr.bf16.mxu0 0
  %76 = vmatpush1.bf16.msra.mxu0 0
  %77 = vmatprep.subr.bf16.mxu0 0
  %78 = vmatpush1.bf16.msra.mxu0 0
  %79 = vmatprep.subr.bf16.mxu0 0
  %80 = vmatpush1.bf16.msra.mxu0 0
  %81 = vmatprep.subr.bf16.mxu0 0
  %82 = vmatpush1.bf16.msra.mxu0 0
  %83 = vmatprep.subr.bf16.mxu0 0
  %84 = vmatpush1.bf16.msra.mxu0 0
  %85 = vmatprep.subr.bf16.mxu0 0
  %86 = vmatpush1.bf16.msra.mxu0 0
  %87 = vmatprep.subr.bf16.mxu0 0
  %88 = vmatpush1.bf16.msra.mxu0 0
  %89 = vmatprep.subr.bf16.mxu0 0
  %90 = vmatpush1.bf16.msra.mxu0 0
  %91 = vmatprep.subr.bf16.mxu0 0
  %92 = vmatpush1.bf16.msra.mxu0 0
  %93 = vmatprep.subr.bf16.mxu0 0
  %94 = vmatpush1.bf16.msra.mxu0 0
  %95 = vmatprep.subr.bf16.mxu0 0
  %96 = vmatpush1.bf16.msra.mxu0 0
  %97 = vmatprep.subr.bf16.mxu0 0
  %98 = vmatpush1.bf16.msra.mxu0 0
  %99 = vmatprep.subr.bf16.mxu0 0
  %100 = vmatpush1.bf16.msra.mxu0 0
  %101 = vmatprep.mubr.bf16.mxu0 0
  %102 = vmatmul.mubr.bf16.gmra.mrb[0].mxu0 %v67
  %v103 = vpop.f32.mrb[0].mxu0
  %v104 = vadd.f32 %v38, %v103
  %v105 = vpop.f32.mrb[0].mxu0
  %v106 = vadd.f32 %v42, %v105
  %v107 = vpop.f32.mrb[0].mxu0
  %v108 = vpop.f32.mrb[0].mxu0
  %109 = vdwg.mxu0
  %v110 = vmax.f32 %v104, 0.0
  %v111 = vmax.f32 %v106, 0.0
  %v112 = vpack.c.bf16 %v110, %v110
  %v113 = vpack.c.bf16 %v111, %v111
  %v114 = vld [vmem:[%s3] sm:$0xf]
  %v115 = vld [vmem:[%s3 + $0x4] sm:$0xf]
  %v116 = vld [vmem:[%s3 + $0x8] sm:$0xf]
  %v117 = vld [vmem:[%s3 + $0xc] sm:$0xf]
  %v118 = vld [vmem:[%s3 + $0x10] sm:$0xf]
  %v119 = vld [vmem:[%s3 + $0x14] sm:$0xf]
  %v120 = vld [vmem:[%s3 + $0x18] sm:$0xf]
  %v121 = vld [vmem:[%s3 + $0x1c] sm:$0xf]
  %v122 = vld [vmem:[%s3 + $0x20] sm:$0xf]
  %v123 = vld [vmem:[%s3 + $0x24] sm:$0xf]
  %v124 = vld [vmem:[%s3 + $0x28] sm:$0xf]
  %v125 = vld [vmem:[%s3 + $0x2c] sm:$0xf]
  %v126 = vld [vmem:[%s3 + $0x30] sm:$0xf]
  %v127 = vld [vmem:[%s3 + $0x34] sm:$0xf]
  %v128 = vld [vmem:[%s3 + $0x38] sm:$0xf]
  %v129 = vld [vmem:[%s3 + $0x3c] sm:$0xf]
  %v130 = vld [vmem:[%s3 + $0x40] sm:$0xf]
  %v131 = vld [vmem:[%s3 + $0x44] sm:$0xf]
  %v132 = vld [vmem:[%s3 + $0x48] sm:$0xf]
  %v133 = vld [vmem:[%s3 + $0x4c] sm:$0xf]
  %v134 = vld [vmem:[%s3 + $0x50] sm:$0xf]
  %v135 = vld [vmem:[%s3 + $0x54] sm:$0xf]
  %v136 = vld [vmem:[%s3 + $0x58] sm:$0xf]
  %v137 = vld [vmem:[%s3 + $0x5c] sm:$0xf]
  %v138 = vld [vmem:[%s3 + $0x60] sm:$0xf]
  %v139 = vld [vmem:[%s3 + $0x64] sm:$0xf]
  %v140 = vld [vmem:[%s3 + $0x68] sm:$0xf]
  %v141 = vld [vmem:[%s3 + $0x6c] sm:$0xf]
  %v142 = vld [vmem:[%s3 + $0x70] sm:$0xf]
  %v143 = vld [vmem:[%s3 + $0x74] sm:$0xf]
  %v144 = vld [vmem:[%s3 + $0x78] sm:$0xf]
  %v145 = vld [vmem:[%s3 + $0x7c] sm:$0xf]
  %v146 = vld [vmem:[%s4] sm:$0x1]
  %v148 = vlaneseq
  %v149 = vshrl.u32 %v148, 7
  %v150 = vsub.s32 0, %v149
  %v151 = vrot.slane %v146, %v150
  %v185 = vunpack.c.l.b16 %v114
  %v186 = vunpack.c.l.b16 %v115
  %v187 = vunpack.c.l.b16 %v116
  %v188 = vunpack.c.l.b16 %v117
  %v189 = vunpack.c.l.b16 %v118
  %v190 = vunpack.c.l.b16 %v119
  %v191 = vunpack.c.l.b16 %v120
  %v192 = vunpack.c.l.b16 %v121
  %v193 = vunpack.c.l.b16 %v122
  %v194 = vunpack.c.l.b16 %v123
  %v195 = vunpack.c.l.b16 %v124
  %v196 = vunpack.c.l.b16 %v125
  %v197 = vunpack.c.l.b16 %v126
  %v198 = vunpack.c.l.b16 %v127
  %v199 = vunpack.c.l.b16 %v128
  %v200 = vunpack.c.l.b16 %v129
  %v201 = vunpack.c.l.b16 %v130
  %v202 = vunpack.c.l.b16 %v131
  %v203 = vunpack.c.l.b16 %v132
  %v204 = vunpack.c.l.b16 %v133
  %v205 = vunpack.c.l.b16 %v134
  %v206 = vunpack.c.l.b16 %v135
  %v207 = vunpack.c.l.b16 %v136
  %v208 = vunpack.c.l.b16 %v137
  %v209 = vunpack.c.l.b16 %v138
  %v210 = vunpack.c.l.b16 %v139
  %v211 = vunpack.c.l.b16 %v140
  %v212 = vunpack.c.l.b16 %v141
  %v213 = vunpack.c.l.b16 %v142
  %v214 = vunpack.c.l.b16 %v143
  %v215 = vunpack.c.l.b16 %v144
  %v216 = vunpack.c.l.b16 %v145
  %v217 = vpack.c.b16 %v186, %v185
  %v218 = vpack.c.b16 %v188, %v187
  %v219 = vpack.c.b16 %v190, %v189
  %v220 = vpack.c.b16 %v192, %v191
  %v221 = vpack.c.b16 %v194, %v193
  %v222 = vpack.c.b16 %v196, %v195
  %v223 = vpack.c.b16 %v198, %v197
  %v224 = vpack.c.b16 %v200, %v199
  %v225 = vpack.c.b16 %v202, %v201
  %v226 = vpack.c.b16 %v204, %v203
  %v227 = vpack.c.b16 %v206, %v205
  %v228 = vpack.c.b16 %v208, %v207
  %v229 = vpack.c.b16 %v210, %v209
  %v230 = vpack.c.b16 %v212, %v211
  %v231 = vpack.c.b16 %v214, %v213
  %v232 = vpack.c.b16 %v216, %v215
  %249 = vmatprep.subr.bf16.mxu0 0
  %250 = vmatpush1.bf16.msra.mxu0 %v217
  %251 = vmatprep.subr.bf16.mxu0 0
  %252 = vmatpush1.bf16.msra.mxu0 %v218
  %253 = vmatprep.subr.bf16.mxu0 0
  %254 = vmatpush1.bf16.msra.mxu0 %v219
  %255 = vmatprep.subr.bf16.mxu0 0
  %256 = vmatpush1.bf16.msra.mxu0 %v220
  %257 = vmatprep.subr.bf16.mxu0 0
  %258 = vmatpush1.bf16.msra.mxu0 %v221
  %259 = vmatprep.subr.bf16.mxu0 0
  %260 = vmatpush1.bf16.msra.mxu0 %v222
  %261 = vmatprep.subr.bf16.mxu0 0
  %262 = vmatpush1.bf16.msra.mxu0 %v223
  %263 = vmatprep.subr.bf16.mxu0 0
  %264 = vmatpush1.bf16.msra.mxu0 %v224
  %265 = vmatprep.subr.bf16.mxu0 0
  %266 = vmatpush1.bf16.msra.mxu0 %v225
  %267 = vmatprep.subr.bf16.mxu0 0
  %268 = vmatpush1.bf16.msra.mxu0 %v226
  %269 = vmatprep.subr.bf16.mxu0 0
  %270 = vmatpush1.bf16.msra.mxu0 %v227
  %271 = vmatprep.subr.bf16.mxu0 0
  %272 = vmatpush1.bf16.msra.mxu0 %v228
  %273 = vmatprep.subr.bf16.mxu0 0
  %274 = vmatpush1.bf16.msra.mxu0 %v229
  %275 = vmatprep.subr.bf16.mxu0 0
  %276 = vmatpush1.bf16.msra.mxu0 %v230
  %277 = vmatprep.subr.bf16.mxu0 0
  %278 = vmatpush1.bf16.msra.mxu0 %v231
  %279 = vmatprep.subr.bf16.mxu0 0
  %280 = vmatpush1.bf16.msra.mxu0 %v232
  %281 = vmatprep.mubr.bf16.mxu0 %v113
  %282 = vmatmul.mubr.bf16.gmra.mrb[0].mxu0 %v112
  %v283 = vpop.f32.mrb[0].mxu0
  %v284 = vadd.f32 %v151, %v283
  %v285 = vpop.f32.mrb[0].mxu0
  %v286 = vpop.f32.mrb[0].mxu0
  %v287 = vpop.f32.mrb[0].mxu0
  %288 = vdwg.mxu0
  %v289 = vmax.f32 %v284, 0.0
  %v290 = vpack.c.bf16 %v289, %v289
  %v291 = vld [vmem:[%s5] sm:$0xf]
  %v292 = vld [vmem:[%s5 + $0x4] sm:$0xf]
  %v293 = vld [vmem:[%s5 + $0x8] sm:$0xf]
  %v294 = vld [vmem:[%s5 + $0xc] sm:$0xf]
  %v295 = vld [vmem:[%s5 + $0x10] sm:$0xf]
  %v296 = vld [vmem:[%s5 + $0x14] sm:$0xf]
  %v297 = vld [vmem:[%s5 + $0x18] sm:$0xf]
  %v298 = vld [vmem:[%s5 + $0x1c] sm:$0xf]
  %v299 = vld [vmem:[%s5 + $0x20] sm:$0xf]
  %v300 = vld [vmem:[%s5 + $0x24] sm:$0xf]
  %v301 = vld [vmem:[%s5 + $0x28] sm:$0xf]
  %v302 = vld [vmem:[%s5 + $0x2c] sm:$0xf]
  %v303 = vld [vmem:[%s5 + $0x30] sm:$0xf]
  %v304 = vld [vmem:[%s5 + $0x34] sm:$0xf]
  %v305 = vld [vmem:[%s5 + $0x38] sm:$0xf]
  %v306 = vld [vmem:[%s5 + $0x3c] sm:$0xf]
  %v307 = vld [vmem:[%s6] sm:$0x1]
  %v309 = vlaneseq
  %v310 = vshrl.u32 %v309, 7
  %v311 = vsub.s32 0, %v310
  %v312 = vrot.slane %v307, %v311
  %v330 = vunpack.c.l.b16 %v291
  %v331 = vunpack.c.l.b16 %v292
  %v332 = vunpack.c.l.b16 %v293
  %v333 = vunpack.c.l.b16 %v294
  %v334 = vunpack.c.l.b16 %v295
  %v335 = vunpack.c.l.b16 %v296
  %v336 = vunpack.c.l.b16 %v297
  %v337 = vunpack.c.l.b16 %v298
  %v338 = vunpack.c.l.b16 %v299
  %v339 = vunpack.c.l.b16 %v300
  %v340 = vunpack.c.l.b16 %v301
  %v341 = vunpack.c.l.b16 %v302
  %v342 = vunpack.c.l.b16 %v303
  %v343 = vunpack.c.l.b16 %v304
  %v344 = vunpack.c.l.b16 %v305
  %v345 = vunpack.c.l.b16 %v306
  %v346 = vpack.c.b16 %v331, %v330
  %v347 = vpack.c.b16 %v333, %v332
  %v348 = vpack.c.b16 %v335, %v334
  %v349 = vpack.c.b16 %v337, %v336
  %v350 = vpack.c.b16 %v339, %v338
  %v351 = vpack.c.b16 %v341, %v340
  %v352 = vpack.c.b16 %v343, %v342
  %v353 = vpack.c.b16 %v345, %v344
  %362 = vmatprep.subr.bf16.mxu0 0
  %363 = vmatpush1.bf16.msra.mxu0 %v346
  %364 = vmatprep.subr.bf16.mxu0 0
  %365 = vmatpush1.bf16.msra.mxu0 %v347
  %366 = vmatprep.subr.bf16.mxu0 0
  %367 = vmatpush1.bf16.msra.mxu0 %v348
  %368 = vmatprep.subr.bf16.mxu0 0
  %369 = vmatpush1.bf16.msra.mxu0 %v349
  %370 = vmatprep.subr.bf16.mxu0 0
  %371 = vmatpush1.bf16.msra.mxu0 %v350
  %372 = vmatprep.subr.bf16.mxu0 0
  %373 = vmatpush1.bf16.msra.mxu0 %v351
  %374 = vmatprep.subr.bf16.mxu0 0
  %375 = vmatpush1.bf16.msra.mxu0 %v352
  %376 = vmatprep.subr.bf16.mxu0 0
  %377 = vmatpush1.bf16.msra.mxu0 %v353
  %378 = vmatprep.subr.bf16.mxu0 0
  %379 = vmatpush1.bf16.msra.mxu0 0
  %380 = vmatprep.subr.bf16.mxu0 0
  %381 = vmatpush1.bf16.msra.mxu0 0
  %382 = vmatprep.subr.bf16.mxu0 0
  %383 = vmatpush1.bf16.msra.mxu0 0
  %384 = vmatprep.subr.bf16.mxu0 0
  %385 = vmatpush1.bf16.msra.mxu0 0
  %386 = vmatprep.subr.bf16.mxu0 0
  %387 = vmatpush1.bf16.msra.mxu0 0
  %388 = vmatprep.subr.bf16.mxu0 0
  %389 = vmatpush1.bf16.msra.mxu0 0
  %390 = vmatprep.subr.bf16.mxu0 0
  %391 = vmatpush1.bf16.msra.mxu0 0
  %392 = vmatprep.subr.bf16.mxu0 0
  %393 = vmatpush1.bf16.msra.mxu0 0
  %394 = vmatprep.mubr.bf16.mxu0 0
  %395 = vmatmul.mubr.bf16.gmra.mrb[0].mxu0 %v290
  %v396 = vpop.f32.mrb[0].mxu0
  %v397 = vadd.f32 %v312, %v396
  %v398 = vpop.f32.mrb[0].mxu0
  %v399 = vpop.f32.mrb[0].mxu0
  %v400 = vpop.f32.mrb[0].mxu0
  %401 = vdwg.mxu0
  %402 = vst [vmem:[%s7] sm:$0xff] %v397
  // Predicated region
  $region30: #{enhanced_tabular_mlp.1} parent=0 // pred_check
    _
  $region31: #{enhanced_tabular_mlp.1} parent=0 // pred_check_branch
    %404 = sbr.rel (0) target = $region33
  $region32: #{enhanced_tabular_mlp.1} parent=0 // pred_region
    _
  $region33: #{enhanced_tabular_mlp.1} parent=0 // pred_fallthru
    _
  // Predicated region
  $region34: #{enhanced_tabular_mlp.1} parent=0 // pred_check
    _
  $region35: #{enhanced_tabular_mlp.1} parent=0 // pred_check_branch
    %406 = sbr.rel (0) target = $region37
  $region36: #{enhanced_tabular_mlp.1} parent=0 // pred_region
    _
  $region37: #{enhanced_tabular_mlp.1} parent=0 // pred_fallthru
    _

</llo_original>
